<compile_context>
chip_gen: v7x
topology: tpu7x:2x2x1
jax: 0.10.0
libtpu: 0.0.40
codegen_flags: <defaults>
</compile_context>

<pallas_src>
import functools

import jax
import jax.numpy as jnp
from jax.experimental import pallas as pl
from jax.experimental.pallas import tpu as pltpu

_LANE = 128    # vreg lane width
_SUBLANE = 8   # f32 sublane count


def _round_up(n, m):
    return ((n + m - 1) // m) * m


def _self_attention_kernel(x_ref, w_ref, o_ref, *, seq_len, seq_pad, d_out_pad):
    x = x_ref[...]            # [Sp, Dp]            f32
    w = w_ref[...]            # [3*d_out_pad, Dp]   f32 (Wq pre-scaled by 1/sqrt(d_k))

    # Fused QKV projection: x @ W_cat.T — contract last dims of both operands;
    # the MXU consumes the "transposed" operand directly (no XLU transpose).
    qkv = jax.lax.dot_general(
        x, w, dimension_numbers=(((1,), (1,)), ((), ())),
        preferred_element_type=jnp.float32)               # [Sp, 3*d_out_pad]

    q = qkv[:, 0 * d_out_pad:1 * d_out_pad]               # already scaled
    k = qkv[:, 1 * d_out_pad:2 * d_out_pad]
    v = qkv[:, 2 * d_out_pad:3 * d_out_pad]

    # scores = q @ k.T via dot_general (no relayout of k).
    scores = jax.lax.dot_general(
        q, k, dimension_numbers=(((1,), (1,)), ((), ())),
        preferred_element_type=jnp.float32)               # [Sp, Sp]

    # Padded key columns (zero rows of x) must not receive probability mass.
    # Small [1, Sp] additive bias with a finite large-negative sentinel, only
    # materialized when padding actually exists.
    if seq_pad > seq_len:
        col = jax.lax.broadcasted_iota(jnp.int32, (1, seq_pad), 1)
        scores = scores + jnp.where(col < seq_len, 0.0, -1e30).astype(jnp.float32)

    # Numerically stable softmax; exact divide (overhead-bound at these sizes).
    scores = scores - jnp.max(scores, axis=-1, keepdims=True)
    e = jnp.exp(scores)
    denom = jnp.sum(e, axis=-1, keepdims=True)
    attn = e / denom

    ctx = jnp.dot(attn, v, preferred_element_type=jnp.float32)  # [Sp, d_out_pad]
    o_ref[...] = ctx.astype(o_ref.dtype)


def make_self_attention(w_query, w_key, w_value):
    """Pack the (static) weights once; return a jitted forward fn of x.

    Weights are PyTorch-style [d_out, d_in]; returned fn maps [seq, d_in] ->
    [seq, d_out].
    """
    d_out, d_in = w_query.shape
    d_in_p = max(_LANE, _round_up(d_in, _LANE))
    d_out_p = max(_LANE, _round_up(d_out, _LANE))
    scale = 1.0 / float(d_out) ** 0.5

    # One-time packing (NOT in the per-call path): Wq / Wk / Wv each occupy
    # their own d_out_p-row band; the softmax 1/sqrt(d_k) scale is folded into
    # the Wq band so the kernel never applies it.
    w_p = jnp.zeros((3 * d_out_p, d_in_p), w_query.dtype)
    w_p = w_p.at[0 * d_out_p:0 * d_out_p + d_out, :d_in].set(w_query * scale)
    w_p = w_p.at[1 * d_out_p:1 * d_out_p + d_out, :d_in].set(w_key)
    w_p = w_p.at[2 * d_out_p:2 * d_out_p + d_out, :d_in].set(w_value)
    w_p = jax.device_put(w_p)

    @jax.jit
    def fwd(x):
        seq = x.shape[0]
        seq_p = max(_SUBLANE, _round_up(seq, _SUBLANE))
        # Lane-dense padded input (unmasked vld inside the kernel).
        x_p = jnp.zeros((seq_p, d_in_p), x.dtype).at[:seq, :d_in].set(x)

        kernel = functools.partial(
            _self_attention_kernel,
            seq_len=seq, seq_pad=seq_p, d_out_pad=d_out_p)

        # Toy shapes -> a single full-array block; no grid needed (see TODO at
        # the top of the file for the gridded flash-attention generalization).
        out_p = pl.pallas_call(
            kernel,
            out_shape=jax.ShapeDtypeStruct((seq_p, d_out_p), x.dtype),
            in_specs=[
                pl.BlockSpec(memory_space=pltpu.MemorySpace.VMEM),
                pl.BlockSpec(memory_space=pltpu.MemorySpace.VMEM),
            ],
            out_specs=pl.BlockSpec(memory_space=pltpu.MemorySpace.VMEM),
        )(x_p, w_p)

        return out_p[:seq, :d_out]

    return fwd


def self_attention_ref(x, w_query, w_key, w_value):
    q = x @ w_query.T
    k = x @ w_key.T
    v = x @ w_value.T
    scores = q @ k.T
    w = jax.nn.softmax(scores / (k.shape[-1] ** 0.5), axis=-1)
    return w @ v


if __name__ == "__main__":
    # Shapes implied by the module usage: seq=6, d_in=3, d_out=2.
    seq, d_in, d_out = 6, 3, 2

    key = jax.random.PRNGKey(0)
    kx, kq, kk, kv = jax.random.split(key, 4)

    x = jax.random.uniform(kx, (seq, d_in), dtype=jnp.float32)
    # nn.Linear(d_in, d_out, bias=False) -> weight of shape [d_out, d_in]
    w_query = jax.random.normal(kq, (d_out, d_in), dtype=jnp.float32) * 0.5
    w_key = jax.random.normal(kk, (d_out, d_in), dtype=jnp.float32) * 0.5
    w_value = jax.random.normal(kv, (d_out, d_in), dtype=jnp.float32) * 0.5

    attn = make_self_attention(w_query, w_key, w_value)   # weights packed once
    out = jax.block_until_ready(attn(x))

    ref = self_attention_ref(x, w_query, w_key, w_value)
    assert out.shape == (seq, d_out)
    assert jnp.allclose(out, ref, atol=1e-5, rtol=1e-5), "mismatch vs reference"

    print("KERNEL_OK")
</pallas_src>

<mosaic_0001>
module attributes {stable_mosaic.version = 11 : i64} {
  func.func @_self_attention_kernel(%arg0: memref<8x128xf32, #tpu.memory_space<vmem>>, %arg1: memref<384x128xf32, #tpu.memory_space<vmem>>, %arg2: memref<8x128xf32, #tpu.memory_space<vmem>>) attributes {dimension_semantics = [], scalar_prefetch = 0 : i64, scratch_operands = 0 : i64, tpu.core_type = #tpu.core_type<tc>} {
    %c0 = arith.constant 0 : index
    %c0_0 = arith.constant 0 : index
    %0 = vector.load %arg0[%c0, %c0_0] : memref<8x128xf32, #tpu.memory_space<vmem>>, vector<8x128xf32>
    %c0_1 = arith.constant 0 : index
    %c0_2 = arith.constant 0 : index
    %1 = vector.load %arg1[%c0_1, %c0_2] : memref<384x128xf32, #tpu.memory_space<vmem>>, vector<384x128xf32>
    %cst = arith.constant dense<0.000000e+00> : vector<8x384xf32>
    %2 = tpu.matmul %0, %1, %cst {dimension_numbers = #tpu.dot_dimension_numbers<[1], [1], [0], [0], [0, 0, 1, 0], [], []>} : vector<8x128xf32>, vector<384x128xf32>, vector<8x384xf32> -> vector<8x384xf32>
    %3 = vector.extract_strided_slice %2 {offsets = [0, 0], sizes = [8, 128], strides = [1, 1]} : vector<8x384xf32> to vector<8x128xf32>
    %4 = vector.extract_strided_slice %2 {offsets = [0, 128], sizes = [8, 128], strides = [1, 1]} : vector<8x384xf32> to vector<8x128xf32>
    %5 = vector.extract_strided_slice %2 {offsets = [0, 256], sizes = [8, 128], strides = [1, 1]} : vector<8x384xf32> to vector<8x128xf32>
    %cst_3 = arith.constant dense<0.000000e+00> : vector<8x8xf32>
    %6 = tpu.matmul %3, %4, %cst_3 {dimension_numbers = #tpu.dot_dimension_numbers<[1], [1], [0], [0], [0, 0, 1, 0], [], []>} : vector<8x128xf32>, vector<8x128xf32>, vector<8x8xf32> -> vector<8x8xf32>
    %7 = tpu.iota {dimensions = array<i32: 1>} : vector<1x8xi32>
    %c6_i32 = arith.constant 6 : i32
    %8 = vector.broadcast %c6_i32 : i32 to vector<1x8xi32>
    %9 = arith.cmpi slt, %7, %8 : vector<1x8xi32>
    %cst_4 = arith.constant 0.000000e+00 : f32
    %cst_5 = arith.constant -1.000000e+30 : f32
    %10 = vector.broadcast %cst_4 : f32 to vector<1x8xf32>
    %11 = vector.broadcast %cst_5 : f32 to vector<1x8xf32>
    %12 = arith.select %9, %10, %11 : vector<1x8xi1>, vector<1x8xf32>
    %13 = vector.broadcast %12 : vector<1x8xf32> to vector<8x8xf32>
    %14 = arith.addf %6, %13 : vector<8x8xf32>
    %cst_6 = arith.constant dense<0xFF800000> : vector<8xf32>
    %15 = vector.multi_reduction <maximumf>, %14, %cst_6 [1] : vector<8x8xf32> to vector<8xf32>
    %16 = vector.shape_cast %15 : vector<8xf32> to vector<8x1xf32>
    %17 = vector.broadcast %16 : vector<8x1xf32> to vector<8x8xf32>
    %18 = arith.subf %14, %17 : vector<8x8xf32>
    %19 = math.exp %18 : vector<8x8xf32>
    %cst_7 = arith.constant dense<0.000000e+00> : vector<8xf32>
    %20 = vector.multi_reduction <add>, %19, %cst_7 [1] : vector<8x8xf32> to vector<8xf32>
    %21 = vector.shape_cast %20 : vector<8xf32> to vector<8x1xf32>
    %22 = vector.broadcast %21 : vector<8x1xf32> to vector<8x8xf32>
    %23 = arith.divf %19, %22 : vector<8x8xf32>
    %cst_8 = arith.constant dense<0.000000e+00> : vector<8x128xf32>
    %24 = tpu.matmul %23, %5, %cst_8 {dimension_numbers = #tpu.dot_dimension_numbers<[1], [0], [0], [1], [0, 0, 1, 1], [], []>} : vector<8x8xf32>, vector<8x128xf32>, vector<8x128xf32> -> vector<8x128xf32>
    %c0_9 = arith.constant 0 : index
    %c0_10 = arith.constant 0 : index
    %25 = vector.load %arg2[%c0_9, %c0_10] : memref<8x128xf32, #tpu.memory_space<vmem>>, vector<8x128xf32>
    tpu.vector_store %arg2[%c0_9, %c0_10], %24 {strides = array<i32>} : memref<8x128xf32, #tpu.memory_space<vmem>>, vector<8x128xf32>,
    return
  }
}

</mosaic_0001>

<llo_original>
// kernel: fwd.1
$region0: #{fwd.1}
  #allocation0 [shape = 'u32[]', space=smem, size = 0x4, offset = 0x4, fixed_abs, tag = 'smem constant byte address 0x4 - core index']
  #allocation1 [shape = 'u32[144,128]{1,0:T(1,128)}', space=vmem, size = 0x12000, scoped, tag = 'internal scratch']
  %s0 = inlined_call_operand.vmem [shape: f32[8,128], index: 0, kind: input, shape index: {}]
  %s1 = inlined_call_operand.hbm [shape: f32[384,128], index: 1, kind: input, shape index: {}]
  %s2 = inlined_call_operand.vmem [shape: f32[8,128], index: 2, kind: output, shape index: {}]
  %s3 = sld [smem:[#allocation0]]
  $region22: #{fwd.1} parent=0
    _
  %s5 = ssub.s32 1, %s3
  %s6 = scalar_select 0, %s5, %s3
  $region1: #{fwd.1} parent=0
    #allocation2 [shape = 'u8[196608]{0}', space=vmem, size = 0x30000, scoped, tag = 'input window, operand 1, single buffered']
    #allocation3 [shape = 's32[1]{0}', space=sflag, size = 0x4, scoped, tag = 'scoped memory for fwd.1']
    %7 = vsyncpa [#allocation3], 0
    // Predicated region
    $region2: #{fwd.1} parent=1 // pred_check
      _
    $region3: #{fwd.1} parent=1 // pred_check_branch
      %9 = sbr.rel (0) target = $region5
    $region4: #{fwd.1} parent=1 // pred_region
      _
    $region5: #{fwd.1} parent=1 // pred_fallthru
      _
    // Predicated region
    $region6: #{fwd.1} parent=1 // pred_check
      _
    $region7: #{fwd.1} parent=1 // pred_check_branch
      %11 = sbr.rel (0) target = $region9
    $region8: #{fwd.1} parent=1 // pred_region
      %s13 = ssub.s32 6144, 6144
      %14 = vsyncadd [#allocation3], %s13
      %s15 = sshll.u32 [#allocation2], 4
      %s16 = int_to_ptr.vmem [resolvable:$true] %s15
      %21 = dma.hbm_to_vmem [thread:$0]  %s1, 6144, %s16, [#allocation3], 128, 128, 8
    $region9: #{fwd.1} parent=1 // pred_fallthru
      _
    // Predicated region
    $region10: #{fwd.1} parent=1 // pred_check
      _
    $region11: #{fwd.1} parent=1 // pred_check_branch
      %23 = sbr.rel (0) target = $region13
    $region12: #{fwd.1} parent=1 // pred_region
      %24 = dma.done [#allocation3], 6144
    $region13: #{fwd.1} parent=1 // pred_fallthru
      _
    %v25 = vld [vmem:[%s0] sm:$0xff]
    %v26 = vld [vmem:[#allocation2] sm:$0xff]
    %v27 = vld [vmem:[#allocation2 + $0x8] sm:$0xff]
    %v28 = vld [vmem:[#allocation2 + $0x10] sm:$0xff]
    %v29 = vld [vmem:[#allocation2 + $0x18] sm:$0xff]
    %v30 = vld [vmem:[#allocation2 + $0x20] sm:$0xff]
    %v31 = vld [vmem:[#allocation2 + $0x28] sm:$0xff]
    %v32 = vld [vmem:[#allocation2 + $0x30] sm:$0xff]
    %v33 = vld [vmem:[#allocation2 + $0x38] sm:$0xff]
    %v34 = vld [vmem:[#allocation2 + $0x40] sm:$0xff]
    %v35 = vld [vmem:[#allocation2 + $0x48] sm:$0xff]
    %v36 = vld [vmem:[#allocation2 + $0x50] sm:$0xff]
    %v37 = vld [vmem:[#allocation2 + $0x58] sm:$0xff]
    %v38 = vld [vmem:[#allocation2 + $0x60] sm:$0xff]
    %v39 = vld [vmem:[#allocation2 + $0x68] sm:$0xff]
    %v40 = vld [vmem:[#allocation2 + $0x70] sm:$0xff]
    %v41 = vld [vmem:[#allocation2 + $0x78] sm:$0xff]
    %v42 = vld [vmem:[#allocation2 + $0x80] sm:$0xff]
    %v43 = vld [vmem:[#allocation2 + $0x88] sm:$0xff]
    %v44 = vld [vmem:[#allocation2 + $0x90] sm:$0xff]
    %v45 = vld [vmem:[#allocation2 + $0x98] sm:$0xff]
    %v46 = vld [vmem:[#allocation2 + $0xa0] sm:$0xff]
    %v47 = vld [vmem:[#allocation2 + $0xa8] sm:$0xff]
    %v48 = vld [vmem:[#allocation2 + $0xb0] sm:$0xff]
    %v49 = vld [vmem:[#allocation2 + $0xb8] sm:$0xff]
    %v50 = vld [vmem:[#allocation2 + $0xc0] sm:$0xff]
    %v51 = vld [vmem:[#allocation2 + $0xc8] sm:$0xff]
    %v52 = vld [vmem:[#allocation2 + $0xd0] sm:$0xff]
    %v53 = vld [vmem:[#allocation2 + $0xd8] sm:$0xff]
    %v54 = vld [vmem:[#allocation2 + $0xe0] sm:$0xff]
    %v55 = vld [vmem:[#allocation2 + $0xe8] sm:$0xff]
    %v56 = vld [vmem:[#allocation2 + $0xf0] sm:$0xff]
    %v57 = vld [vmem:[#allocation2 + $0xf8] sm:$0xff]
    %v58 = vld [vmem:[#allocation2 + $0x100] sm:$0xff]
    %v59 = vld [vmem:[#allocation2 + $0x108] sm:$0xff]
    %v60 = vld [vmem:[#allocation2 + $0x110] sm:$0xff]
    %v61 = vld [vmem:[#allocation2 + $0x118] sm:$0xff]
    %v62 = vld [vmem:[#allocation2 + $0x120] sm:$0xff]
    %v63 = vld [vmem:[#allocation2 + $0x128] sm:$0xff]
    %v64 = vld [vmem:[#allocation2 + $0x130] sm:$0xff]
    %v65 = vld [vmem:[#allocation2 + $0x138] sm:$0xff]
    %v66 = vld [vmem:[#allocation2 + $0x140] sm:$0xff]
    %v67 = vld [vmem:[#allocation2 + $0x148] sm:$0xff]
    %v68 = vld [vmem:[#allocation2 + $0x150] sm:$0xff]
    %v69 = vld [vmem:[#allocation2 + $0x158] sm:$0xff]
    %v70 = vld [vmem:[#allocation2 + $0x160] sm:$0xff]
    %v71 = vld [vmem:[#allocation2 + $0x168] sm:$0xff]
    %v72 = vld [vmem:[#allocation2 + $0x170] sm:$0xff]
    %v73 = vld [vmem:[#allocation2 + $0x178] sm:$0xff]
    %74 = vmatprep.subr.mxu0 0.0
    %75 = vmatpush1.xpose.msra.mxu0 %v26
    %76 = vmatprep.subr.mxu0 0.0
    %77 = vmatpush1.xpose.msra.mxu0 %v27
    %78 = vmatprep.subr.mxu0 0.0
    %79 = vmatpush1.xpose.msra.mxu0 %v28
    %80 = vmatprep.subr.mxu0 0.0
    %81 = vmatpush1.xpose.msra.mxu0 %v29
    %82 = vmatprep.subr.mxu0 0.0
    %83 = vmatpush1.xpose.msra.mxu0 %v30
    %84 = vmatprep.subr.mxu0 0.0
    %85 = vmatpush1.xpose.msra.mxu0 %v31
    %86 = vmatprep.subr.mxu0 0.0
    %87 = vmatpush1.xpose.msra.mxu0 %v32
    %88 = vmatprep.subr.mxu0 0.0
    %89 = vmatpush1.xpose.msra.mxu0 %v33
    %90 = vmatprep.subr.mxu0 0.0
    %91 = vmatpush1.xpose.msra.mxu0 %v34
    %92 = vmatprep.subr.mxu0 0.0
    %93 = vmatpush1.xpose.msra.mxu0 %v35
    %94 = vmatprep.subr.mxu0 0.0
    %95 = vmatpush1.xpose.msra.mxu0 %v36
    %96 = vmatprep.subr.mxu0 0.0
    %97 = vmatpush1.xpose.msra.mxu0 %v37
    %98 = vmatprep.subr.mxu0 0.0
    %99 = vmatpush1.xpose.msra.mxu0 %v38
    %100 = vmatprep.subr.mxu0 0.0
    %101 = vmatpush1.xpose.msra.mxu0 %v39
    %102 = vmatprep.subr.mxu0 0.0
    %103 = vmatpush1.xpose.msra.mxu0 %v40
    %104 = vmatprep.subr.mxu0 0.0
    %105 = vmatpush1.xpose.msra.mxu0 %v41
    %106 = vmatprep.subr.mxu0 0.0
    %107 = vmatpush1.xpose.msra.mxu0 %v42
    %108 = vmatprep.subr.mxu0 0.0
    %109 = vmatpush1.xpose.msra.mxu0 %v43
    %110 = vmatprep.subr.mxu0 0.0
    %111 = vmatpush1.xpose.msra.mxu0 %v44
    %112 = vmatprep.subr.mxu0 0.0
    %113 = vmatpush1.xpose.msra.mxu0 %v45
    %114 = vmatprep.subr.mxu0 0.0
    %115 = vmatpush1.xpose.msra.mxu0 %v46
    %116 = vmatprep.subr.mxu0 0.0
    %117 = vmatpush1.xpose.msra.mxu0 %v47
    %118 = vmatprep.subr.mxu0 0.0
    %119 = vmatpush1.xpose.msra.mxu0 %v48
    %120 = vmatprep.subr.mxu0 0.0
    %121 = vmatpush1.xpose.msra.mxu0 %v49
    %122 = vmatprep.subr.mxu0 0.0
    %123 = vmatpush1.xpose.msra.mxu0 %v50
    %124 = vmatprep.subr.mxu0 0.0
    %125 = vmatpush1.xpose.msra.mxu0 %v51
    %126 = vmatprep.subr.mxu0 0.0
    %127 = vmatpush1.xpose.msra.mxu0 %v52
    %128 = vmatprep.subr.mxu0 0.0
    %129 = vmatpush1.xpose.msra.mxu0 %v53
    %130 = vmatprep.subr.mxu0 0.0
    %131 = vmatpush1.xpose.msra.mxu0 %v54
    %132 = vmatprep.subr.mxu0 0.0
    %133 = vmatpush1.xpose.msra.mxu0 %v55
    %134 = vmatprep.subr.mxu0 0.0
    %135 = vmatpush1.xpose.msra.mxu0 %v56
    %136 = vmatprep.subr.mxu0 0.0
    %137 = vmatpush1.xpose.msra.mxu0 %v57
    %138 = vmatprep.mubr.f32.mxu0 0.0
    %139 = vmatmul.mubr.f32.gmra.mrb[0].mxu0 %v25
    %v140 = vpop.f32.mrb[0].mxu0
    %v141 = vadd.f32 0.0, %v140
    %v142 = vpop.f32.mrb[0].mxu0
    %v143 = vadd.f32 0.0, %v142
    %144 = vdwg.mxu0
    %145 = vmatprep.subr.mxu0 0.0
    %146 = vmatpush1.xpose.msra.mxu0 %v58
    %147 = vmatprep.subr.mxu0 0.0
    %148 = vmatpush1.xpose.msra.mxu0 %v59
    %149 = vmatprep.subr.mxu0 0.0
    %150 = vmatpush1.xpose.msra.mxu0 %v60
    %151 = vmatprep.subr.mxu0 0.0
    %152 = vmatpush1.xpose.msra.mxu0 %v61
    %153 = vmatprep.subr.mxu0 0.0
    %154 = vmatpush1.xpose.msra.mxu0 %v62
    %155 = vmatprep.subr.mxu0 0.0
    %156 = vmatpush1.xpose.msra.mxu0 %v63
    %157 = vmatprep.subr.mxu0 0.0
    %158 = vmatpush1.xpose.msra.mxu0 %v64
    %159 = vmatprep.subr.mxu0 0.0
    %160 = vmatpush1.xpose.msra.mxu0 %v65
    %161 = vmatprep.subr.mxu0 0.0
    %162 = vmatpush1.xpose.msra.mxu0 %v66
    %163 = vmatprep.subr.mxu0 0.0
    %164 = vmatpush1.xpose.msra.mxu0 %v67
    %165 = vmatprep.subr.mxu0 0.0
    %166 = vmatpush1.xpose.msra.mxu0 %v68
    %167 = vmatprep.subr.mxu0 0.0
    %168 = vmatpush1.xpose.msra.mxu0 %v69
    %169 = vmatprep.subr.mxu0 0.0
    %170 = vmatpush1.xpose.msra.mxu0 %v70
    %171 = vmatprep.subr.mxu0 0.0
    %172 = vmatpush1.xpose.msra.mxu0 %v71
    %173 = vmatprep.subr.mxu0 0.0
    %174 = vmatpush1.xpose.msra.mxu0 %v72
    %175 = vmatprep.subr.mxu0 0.0
    %176 = vmatpush1.xpose.msra.mxu0 %v73
    %177 = vmatprep.subr.mxu0 0.0
    %178 = vmatpush1.xpose.msra.mxu0 0.0
    %179 = vmatprep.subr.mxu0 0.0
    %180 = vmatpush1.xpose.msra.mxu0 0.0
    %181 = vmatprep.subr.mxu0 0.0
    %182 = vmatpush1.xpose.msra.mxu0 0.0
    %183 = vmatprep.subr.mxu0 0.0
    %184 = vmatpush1.xpose.msra.mxu0 0.0
    %185 = vmatprep.subr.mxu0 0.0
    %186 = vmatpush1.xpose.msra.mxu0 0.0
    %187 = vmatprep.subr.mxu0 0.0
    %188 = vmatpush1.xpose.msra.mxu0 0.0
    %189 = vmatprep.subr.mxu0 0.0
    %190 = vmatpush1.xpose.msra.mxu0 0.0
    %191 = vmatprep.subr.mxu0 0.0
    %192 = vmatpush1.xpose.msra.mxu0 0.0
    %193 = vmatprep.subr.mxu0 0.0
    %194 = vmatpush1.xpose.msra.mxu0 0.0
    %195 = vmatprep.subr.mxu0 0.0
    %196 = vmatpush1.xpose.msra.mxu0 0.0
    %197 = vmatprep.subr.mxu0 0.0
    %198 = vmatpush1.xpose.msra.mxu0 0.0
    %199 = vmatprep.subr.mxu0 0.0
    %200 = vmatpush1.xpose.msra.mxu0 0.0
    %201 = vmatprep.subr.mxu0 0.0
    %202 = vmatpush1.xpose.msra.mxu0 0.0
    %203 = vmatprep.subr.mxu0 0.0
    %204 = vmatpush1.xpose.msra.mxu0 0.0
    %205 = vmatprep.subr.mxu0 0.0
    %206 = vmatpush1.xpose.msra.mxu0 0.0
    %207 = vmatprep.subr.mxu0 0.0
    %208 = vmatpush1.xpose.msra.mxu0 0.0
    %209 = vmatprep.mubr.f32.mxu0 0.0
    %210 = vmatmul.mubr.f32.gmra.mrb[0].mxu0 %v25
    %v211 = vpop.f32.mrb[0].mxu0
    %v212 = vadd.f32 0.0, %v211
    %v213 = vpop.f32.mrb[0].mxu0
    %214 = vdwg.mxu0
    %v215 = vlaneseq
    %v216 = vand.u32 %v215, 127
    %vm217 = vcmp.lt.s32.totalorder %v216, 6
    %v218 = vsel %vm217, 0.0, -1e+30
    %219 = vmatprep.subr.mxu0 0.0
    %220 = vmatpush1.xpose.msra.mxu0 %v143
    %221 = vmatprep.subr.mxu0 0.0
    %222 = vmatpush1.xpose.msra.mxu0 0.0
    %223 = vmatprep.subr.mxu0 0.0
    %224 = vmatpush1.xpose.msra.mxu0 0.0
    %225 = vmatprep.subr.mxu0 0.0
    %226 = vmatpush1.xpose.msra.mxu0 0.0
    %227 = vmatprep.subr.mxu0 0.0
    %228 = vmatpush1.xpose.msra.mxu0 0.0
    %229 = vmatprep.subr.mxu0 0.0
    %230 = vmatpush1.xpose.msra.mxu0 0.0
    %231 = vmatprep.subr.mxu0 0.0
    %232 = vmatpush1.xpose.msra.mxu0 0.0
    %233 = vmatprep.subr.mxu0 0.0
    %234 = vmatpush1.xpose.msra.mxu0 0.0
    %235 = vmatprep.subr.mxu0 0.0
    %236 = vmatpush1.xpose.msra.mxu0 0.0
    %237 = vmatprep.subr.mxu0 0.0
    %238 = vmatpush1.xpose.msra.mxu0 0.0
    %239 = vmatprep.subr.mxu0 0.0
    %240 = vmatpush1.xpose.msra.mxu0 0.0
    %241 = vmatprep.subr.mxu0 0.0
    %242 = vmatpush1.xpose.msra.mxu0 0.0
    %243 = vmatprep.subr.mxu0 0.0
    %244 = vmatpush1.xpose.msra.mxu0 0.0
    %245 = vmatprep.subr.mxu0 0.0
    %246 = vmatpush1.xpose.msra.mxu0 0.0
    %247 = vmatprep.subr.mxu0 0.0
    %248 = vmatpush1.xpose.msra.mxu0 0.0
    %249 = vmatprep.subr.mxu0 0.0
    %250 = vmatpush1.xpose.msra.mxu0 0.0
    %251 = vmatprep.subr.mxu0 0.0
    %252 = vmatpush1.xpose.msra.mxu0 0.0
    %253 = vmatprep.subr.mxu0 0.0
    %254 = vmatpush1.xpose.msra.mxu0 0.0
    %255 = vmatprep.subr.mxu0 0.0
    %256 = vmatpush1.xpose.msra.mxu0 0.0
    %257 = vmatprep.subr.mxu0 0.0
    %258 = vmatpush1.xpose.msra.mxu0 0.0
    %259 = vmatprep.subr.mxu0 0.0
    %260 = vmatpush1.xpose.msra.mxu0 0.0
    %261 = vmatprep.subr.mxu0 0.0
    %262 = vmatpush1.xpose.msra.mxu0 0.0
    %263 = vmatprep.subr.mxu0 0.0
    %264 = vmatpush1.xpose.msra.mxu0 0.0
    %265 = vmatprep.subr.mxu0 0.0
    %266 = vmatpush1.xpose.msra.mxu0 0.0
    %267 = vmatprep.subr.mxu0 0.0
    %268 = vmatpush1.xpose.msra.mxu0 0.0
    %269 = vmatprep.subr.mxu0 0.0
    %270 = vmatpush1.xpose.msra.mxu0 0.0
    %271 = vmatprep.subr.mxu0 0.0
    %272 = vmatpush1.xpose.msra.mxu0 0.0
    %273 = vmatprep.subr.mxu0 0.0
    %274 = vmatpush1.xpose.msra.mxu0 0.0
    %275 = vmatprep.subr.mxu0 0.0
    %276 = vmatpush1.xpose.msra.mxu0 0.0
    %277 = vmatprep.subr.mxu0 0.0
    %278 = vmatpush1.xpose.msra.mxu0 0.0
    %279 = vmatprep.subr.mxu0 0.0
    %280 = vmatpush1.xpose.msra.mxu0 0.0
    %281 = vmatprep.subr.mxu0 0.0
    %282 = vmatpush1.xpose.msra.mxu0 0.0
    %283 = vmatprep.mubr.f32.mxu0 0.0
    %284 = vmatmul.mubr.f32.gmra.mrb[0].mxu0 %v141
    %v285 = vpop.f32.mrb[0].mxu0
    %v286 = vadd.f32 %v218, %v285
    %v287 = vpop.f32.mrb[0].mxu0
    %288 = vdwg.mxu0
    %vm289 = vcmask 64512
    %v290 = vsel %vm289, %v286, -inf
    %291 = vmax.xlane.f32.xlu0 %v290
    %v292 = vpop.xlane.xlu0 %291
    %v293 = vsub.f32 %v286, %v292
    %v294 = vmul.f32 %v293, 1.442695
    %v295 = vpow.pop %v294
    %v296 = vsel %vm289, %v295, 0.0
    %297 = vadd.xlane.f32.xlu0 %v296
    %v298 = vpop.xlane.xlu0 %297
    %v299 = vrcp.pop %v298
    %v300 = vmul.f32 %v295, %v299
    %v302 = vsel %vm289, %v300, 0
    %304 = vmatprep.subr.mxu0 0.0
    %305 = vmatpush1.msra.mxu0 %v212
    %306 = vmatprep.subr.mxu0 0.0
    %307 = vmatpush1.msra.mxu0 0.0
    %308 = vmatprep.subr.mxu0 0.0
    %309 = vmatpush1.msra.mxu0 0.0
    %310 = vmatprep.subr.mxu0 0.0
    %311 = vmatpush1.msra.mxu0 0.0
    %312 = vmatprep.subr.mxu0 0.0
    %313 = vmatpush1.msra.mxu0 0.0
    %314 = vmatprep.subr.mxu0 0.0
    %315 = vmatpush1.msra.mxu0 0.0
    %316 = vmatprep.subr.mxu0 0.0
    %317 = vmatpush1.msra.mxu0 0.0
    %318 = vmatprep.subr.mxu0 0.0
    %319 = vmatpush1.msra.mxu0 0.0
    %320 = vmatprep.subr.mxu0 0.0
    %321 = vmatpush1.msra.mxu0 0.0
    %322 = vmatprep.subr.mxu0 0.0
    %323 = vmatpush1.msra.mxu0 0.0
    %324 = vmatprep.subr.mxu0 0.0
    %325 = vmatpush1.msra.mxu0 0.0
    %326 = vmatprep.subr.mxu0 0.0
    %327 = vmatpush1.msra.mxu0 0.0
    %328 = vmatprep.subr.mxu0 0.0
    %329 = vmatpush1.msra.mxu0 0.0
    %330 = vmatprep.subr.mxu0 0.0
    %331 = vmatpush1.msra.mxu0 0.0
    %332 = vmatprep.subr.mxu0 0.0
    %333 = vmatpush1.msra.mxu0 0.0
    %334 = vmatprep.subr.mxu0 0.0
    %335 = vmatpush1.msra.mxu0 0.0
    %336 = vmatprep.subr.mxu0 0.0
    %337 = vmatpush1.msra.mxu0 0.0
    %338 = vmatprep.subr.mxu0 0.0
    %339 = vmatpush1.msra.mxu0 0.0
    %340 = vmatprep.subr.mxu0 0.0
    %341 = vmatpush1.msra.mxu0 0.0
    %342 = vmatprep.subr.mxu0 0.0
    %343 = vmatpush1.msra.mxu0 0.0
    %344 = vmatprep.subr.mxu0 0.0
    %345 = vmatpush1.msra.mxu0 0.0
    %346 = vmatprep.subr.mxu0 0.0
    %347 = vmatpush1.msra.mxu0 0.0
    %348 = vmatprep.subr.mxu0 0.0
    %349 = vmatpush1.msra.mxu0 0.0
    %350 = vmatprep.subr.mxu0 0.0
    %351 = vmatpush1.msra.mxu0 0.0
    %352 = vmatprep.subr.mxu0 0.0
    %353 = vmatpush1.msra.mxu0 0.0
    %354 = vmatprep.subr.mxu0 0.0
    %355 = vmatpush1.msra.mxu0 0.0
    %356 = vmatprep.subr.mxu0 0.0
    %357 = vmatpush1.msra.mxu0 0.0
    %358 = vmatprep.subr.mxu0 0.0
    %359 = vmatpush1.msra.mxu0 0.0
    %360 = vmatprep.subr.mxu0 0.0
    %361 = vmatpush1.msra.mxu0 0.0
    %362 = vmatprep.subr.mxu0 0.0
    %363 = vmatpush1.msra.mxu0 0.0
    %364 = vmatprep.subr.mxu0 0.0
    %365 = vmatpush1.msra.mxu0 0.0
    %366 = vmatprep.subr.mxu0 0.0
    %367 = vmatpush1.msra.mxu0 0.0
    %368 = vmatprep.mubr.f32.mxu0 0.0
    %369 = vmatmul.mubr.f32.gmra.mrb[0].mxu0 %v302
    %v370 = vpop.f32.mrb[0].mxu0
    %v371 = vadd.f32 0.0, %v370
    %v372 = vpop.f32.mrb[0].mxu0
    %373 = vdwg.mxu0
    %374 = vst [vmem:[%s2] sm:$0xff] %v371
    // Predicated region
    $region14: #{fwd.1} parent=1 // pred_check
      _
    $region15: #{fwd.1} parent=1 // pred_check_branch
      %376 = sbr.rel (0) target = $region17
    $region16: #{fwd.1} parent=1 // pred_region
      _
    $region17: #{fwd.1} parent=1 // pred_fallthru
      _
    // Predicated region
    $region18: #{fwd.1} parent=1 // pred_check
      _
    $region19: #{fwd.1} parent=1 // pred_check_branch
      %378 = sbr.rel (0) target = $region21
    $region20: #{fwd.1} parent=1 // pred_region
      _
    $region21: #{fwd.1} parent=1 // pred_fallthru
      _
    %379 = vsyncpa [#allocation3], 1

</llo_original>
